<compile_context>
chip_gen: v7x
topology: tpu7x:2x2x1
jax: 0.10.0
libtpu: 0.0.40
codegen_flags: <defaults>
</compile_context>

<pallas_src>
import functools

import jax
import jax.numpy as jnp
from jax import lax
from jax.experimental import pallas as pl
from jax.experimental.pallas import tpu as pltpu

LANE = 128


def _hw_config():
    """Returns (num_tensorcores, max_block_rows, vmem_limit_bytes).

    Defensive: any query/attribute mismatch falls back to the conservative
    v7x-safe configuration with a single parallel part.
    """
    cores = 1
    vmem_cap = None
    try:
        info = pltpu.get_tpu_info()
        for attr in ("num_cores", "core_count", "num_tensorcores",
                     "tensorcore_count", "cores_per_chip"):
            v = getattr(info, attr, None)
            if isinstance(v, int) and v >= 1:
                cores = min(int(v), 2)
                break
        cap = getattr(info, "vmem_capacity_bytes", None)
        if isinstance(cap, int) and cap > 0:
            vmem_cap = cap
    except Exception:
        pass
    if vmem_cap is not None and vmem_cap >= 96 * 1024 * 1024:
        # v5e / v6e: 128 MiB VMEM -> 8192-row blocks (32 MiB of input buffers).
        return cores, 8192, 48 * 1024 * 1024
    # v7x (64 MiB VMEM per TC) or unknown hardware: 16 MiB of input buffers.
    return cores, 4096, 32 * 1024 * 1024


def _consistency_kernel(nm_ref, om_ref, ns_ref, os_ref, num_ref, den_ref,
                        *, inner, block_rows, rows, any_masking):
    p = pl.program_id(0)   # parallel slice (TensorCore on v7x)
    i = pl.program_id(1)   # reduction step within the slice

    @pl.when(i == 0)
    def _init():
        num_ref[...] = jnp.zeros_like(num_ref)
        den_ref[...] = jnp.zeros_like(den_ref)

    nm = nm_ref[...].astype(jnp.float32)
    om = om_ref[...].astype(jnp.float32)
    ns = ns_ref[...].astype(jnp.float32)
    og = os_ref[...].astype(jnp.float32)

    # difference(a, b) = a*(1-b) + b*(1-a) == a + b - 2ab
    d1 = nm + om - 2.0 * nm * om
    d2 = ns + og - 2.0 * ns * og
    d = d1 + d2 - 2.0 * d1 * d2
    clamped = jnp.clip(nm + om + ns + og, 0.0, 1.0)

    def accumulate(dv, cv):
        # Splitting the sublane-major axis by 8 is a layout no-op; the axis-0
        # sum is a chain of vreg adds (pure VPU, no cross-lane work).
        num_ref[...] += jnp.sum(dv.reshape(-1, 8, LANE), axis=0)
        den_ref[...] += jnp.sum(cv.reshape(-1, 8, LANE), axis=0)

    if not any_masking:
        accumulate(d, clamped)
    else:
        row0 = (p * inner + i) * block_rows
        needs_mask = row0 + block_rows > rows

        @pl.when(row0 + block_rows <= rows)
        def _fast():
            accumulate(d, clamped)

        @pl.when(needs_mask)
        def _masked():
            row_ids = row0 + lax.broadcasted_iota(jnp.int32, (block_rows, 1), 0)
            valid = row_ids < rows
            # Keep these as selects: masked rows may hold garbage/NaN from
            # uninitialized boundary padding; a select discards them safely.
            accumulate(jnp.where(valid, d, 0.0),
                       jnp.where(valid, clamped, 0.0))


def naked_consistency_loss(new_mask, old_mask, new_seg, old_seg, epsilon=1e-5):
    n_elem = new_mask.size
    assert (old_mask.size == n_elem and new_seg.size == n_elem
            and old_seg.size == n_elem)

    flats = [x.reshape(-1) for x in (new_mask, old_mask, new_seg, old_seg)]
    n_main = (n_elem // LANE) * LANE

    # Tail (< 128 elements) handled with plain jnp: no full-array pad copy on
    # unaligned inputs of a purely HBM-bandwidth-bound kernel.
    tail_num = jnp.float32(0.0)
    tail_den = jnp.float32(0.0)
    if n_main != n_elem:
        tnm, tom, tns, tos = [
            lax.slice(x, (n_main,), (n_elem,)).astype(jnp.float32)
            for x in flats]
        td1 = tnm + tom - 2.0 * tnm * tom
        td2 = tns + tos - 2.0 * tns * tos
        tail_num = jnp.sum(td1 + td2 - 2.0 * td1 * td2)
        tail_den = jnp.sum(jnp.clip(tnm + tom + tns + tos, 0.0, 1.0))

    if n_main == 0:
        # Degenerate (< 128 elements): nothing for the kernel to do.
        return tail_num / (tail_den + epsilon * n_elem)

    if n_main == n_elem:
        mats = [x.reshape(-1, LANE) for x in flats]      # free bitcast-reshape
    else:
        mats = [lax.slice(x, (0,), (n_main,)).reshape(-1, LANE) for x in flats]
    rows = n_main // LANE

    num_parts_hw, max_block_rows, vmem_limit = _hw_config()

    # Biggest block that makes sense for this input (multiple of 16 so bf16
    # inputs stay sublane-tile aligned), capped per generation for VMEM.
    block_rows = min(max_block_rows, ((rows + 15) // 16) * 16)
    num_blocks = -(-rows // block_rows)
    parts = max(1, min(num_parts_hw, num_blocks))
    inner = -(-num_blocks // parts)
    any_masking = (rows % block_rows != 0) or (inner * parts != num_blocks)

    def in_map(p, i):
        # Clamp so duplicated blocks of a short parallel slice stay in bounds;
        # the kernel masks them out via the row index.
        return (jnp.minimum(p * inner + i, num_blocks - 1), 0)

    in_spec = pl.BlockSpec((block_rows, LANE), in_map)
    out_spec = pl.BlockSpec((8, LANE), lambda p, i: (p, 0))
    out_shape = jax.ShapeDtypeStruct((parts * 8, LANE), jnp.float32)

    kernel = functools.partial(
        _consistency_kernel,
        inner=inner, block_rows=block_rows, rows=rows, any_masking=any_masking)

    in_bytes = sum(int(m.size) * m.dtype.itemsize for m in mats)
    out_bytes = 2 * parts * 8 * LANE * 4
    cost = pl.CostEstimate(flops=20 * n_main, transcendentals=0,
                           bytes_accessed=in_bytes + out_bytes)

    num_p, den_p = pl.pallas_call(
        kernel,
        out_shape=(out_shape, out_shape),
        grid_spec=pltpu.PrefetchScalarGridSpec(
            num_scalar_prefetch=0,
            grid=(parts, inner),
            in_specs=[in_spec, in_spec, in_spec, in_spec],
            out_specs=[out_spec, out_spec],
        ),
        compiler_params=pltpu.CompilerParams(
            dimension_semantics=("parallel", "arbitrary"),
            vmem_limit_bytes=vmem_limit),
        cost_estimate=cost,
    )(*mats)

    # Single cross-lane reduction, done once outside the grid loop.
    num = jnp.sum(num_p) + tail_num
    den = jnp.sum(den_p) + tail_den + epsilon * n_elem
    return num / den


def _reference(new_mask, old_mask, new_seg, old_seg, epsilon=1e-5):
    def difference(a, b):
        return a * (1 - b) + b * (1 - a)
    num = jnp.sum(difference(difference(new_mask, old_mask),
                             difference(new_seg, old_seg)))
    den = jnp.sum(jnp.clip(new_mask + old_mask + new_seg + old_seg, 0, 1)
                  + epsilon)
    return num / den


if __name__ == "__main__":
    def run_case(seed, shape):
        k1, k2, k3, k4 = jax.random.split(jax.random.PRNGKey(seed), 4)
        nm = jax.random.uniform(k1, shape, dtype=jnp.float32)
        om = jax.random.uniform(k2, shape, dtype=jnp.float32)
        ns = jax.random.uniform(k3, shape, dtype=jnp.float32)
        og = jax.random.uniform(k4, shape, dtype=jnp.float32)
        loss = jax.block_until_ready(naked_consistency_loss(nm, om, ns, og))
        ref = _reference(nm, om, ns, og)
        assert jnp.allclose(loss, ref, rtol=1e-5, atol=1e-6), (shape, loss, ref)

    # Lane-aligned fast path (NCHW, matching the PyTorch convention).
    run_case(0, (2, 4, 16, 16))
    # Unaligned element count: kernel handles the lane-aligned main slab,
    # the <128-element tail is folded in by the wrapper with plain jnp.
    run_case(1, (2, 3, 19, 19))

    print("KERNEL_OK")
</pallas_src>

<mosaic_0001>
module attributes {stable_mosaic.version = 11 : i64} {
  func.func @_consistency_kernel(%arg0: i32, %arg1: i32, %arg2: memref<16x128xf32, #tpu.memory_space<vmem>>, %arg3: memref<16x128xf32, #tpu.memory_space<vmem>>, %arg4: memref<16x128xf32, #tpu.memory_space<vmem>>, %arg5: memref<16x128xf32, #tpu.memory_space<vmem>>, %arg6: memref<8x128xf32, #tpu.memory_space<vmem>>, %arg7: memref<8x128xf32, #tpu.memory_space<vmem>>) attributes {dimension_semantics = [#tpu.dimension_semantics<parallel>, #tpu.dimension_semantics<arbitrary>], iteration_bounds = array<i64: 1, 1>, scalar_prefetch = 0 : i64, scratch_operands = 0 : i64, tpu.core_type = #tpu.core_type<tc>, window_params = [{transform_indices = @transform_0, window_bounds = array<i64: 16, 128>}, {transform_indices = @transform_1, window_bounds = array<i64: 16, 128>}, {transform_indices = @transform_2, window_bounds = array<i64: 16, 128>}, {transform_indices = @transform_3, window_bounds = array<i64: 16, 128>}, {transform_indices = @transform_4, window_bounds = array<i64: 8, 128>}, {transform_indices = @transform_5, window_bounds = array<i64: 8, 128>}]} {
    %c0_i32 = arith.constant 0 : i32
    %0 = arith.cmpi eq, %arg1, %c0_i32 : i32
    %1 = arith.extui %0 : i1 to i32
    %c0_i32_0 = arith.constant 0 : i32
    %2 = arith.cmpi ne, %1, %c0_i32_0 : i32
    scf.if %2 {
      %cst_22 = arith.constant 0.000000e+00 : f32
      %39 = vector.broadcast %cst_22 : f32 to vector<8x128xf32>
      %c0_23 = arith.constant 0 : index
      %c0_24 = arith.constant 0 : index
      %40 = vector.load %arg6[%c0_23, %c0_24] : memref<8x128xf32, #tpu.memory_space<vmem>>, vector<8x128xf32>
      tpu.vector_store %arg6[%c0_23, %c0_24], %39 {strides = array<i32>} : memref<8x128xf32, #tpu.memory_space<vmem>>, vector<8x128xf32>,
      %cst_25 = arith.constant 0.000000e+00 : f32
      %41 = vector.broadcast %cst_25 : f32 to vector<8x128xf32>
      %c0_26 = arith.constant 0 : index
      %c0_27 = arith.constant 0 : index
      %42 = vector.load %arg7[%c0_26, %c0_27] : memref<8x128xf32, #tpu.memory_space<vmem>>, vector<8x128xf32>
      tpu.vector_store %arg7[%c0_26, %c0_27], %41 {strides = array<i32>} : memref<8x128xf32, #tpu.memory_space<vmem>>, vector<8x128xf32>,
    } else {
    }
    %c0 = arith.constant 0 : index
    %c0_1 = arith.constant 0 : index
    %3 = vector.load %arg2[%c0, %c0_1] : memref<16x128xf32, #tpu.memory_space<vmem>>, vector<16x128xf32>
    %c0_2 = arith.constant 0 : index
    %c0_3 = arith.constant 0 : index
    %4 = vector.load %arg3[%c0_2, %c0_3] : memref<16x128xf32, #tpu.memory_space<vmem>>, vector<16x128xf32>
    %c0_4 = arith.constant 0 : index
    %c0_5 = arith.constant 0 : index
    %5 = vector.load %arg4[%c0_4, %c0_5] : memref<16x128xf32, #tpu.memory_space<vmem>>, vector<16x128xf32>
    %c0_6 = arith.constant 0 : index
    %c0_7 = arith.constant 0 : index
    %6 = vector.load %arg5[%c0_6, %c0_7] : memref<16x128xf32, #tpu.memory_space<vmem>>, vector<16x128xf32>
    %7 = arith.addf %3, %4 : vector<16x128xf32>
    %cst = arith.constant 2.000000e+00 : f32
    %8 = vector.broadcast %cst : f32 to vector<16x128xf32>
    %9 = arith.mulf %8, %3 : vector<16x128xf32>
    %10 = arith.mulf %9, %4 : vector<16x128xf32>
    %11 = arith.subf %7, %10 : vector<16x128xf32>
    %12 = arith.addf %5, %6 : vector<16x128xf32>
    %cst_8 = arith.constant 2.000000e+00 : f32
    %13 = vector.broadcast %cst_8 : f32 to vector<16x128xf32>
    %14 = arith.mulf %13, %5 : vector<16x128xf32>
    %15 = arith.mulf %14, %6 : vector<16x128xf32>
    %16 = arith.subf %12, %15 : vector<16x128xf32>
    %17 = arith.addf %11, %16 : vector<16x128xf32>
    %cst_9 = arith.constant 2.000000e+00 : f32
    %18 = vector.broadcast %cst_9 : f32 to vector<16x128xf32>
    %19 = arith.mulf %18, %11 : vector<16x128xf32>
    %20 = arith.mulf %19, %16 : vector<16x128xf32>
    %21 = arith.subf %17, %20 : vector<16x128xf32>
    %22 = arith.addf %3, %4 : vector<16x128xf32>
    %23 = arith.addf %22, %5 : vector<16x128xf32>
    %24 = arith.addf %23, %6 : vector<16x128xf32>
    %cst_10 = arith.constant 0.000000e+00 : f32
    %cst_11 = arith.constant 1.000000e+00 : f32
    %25 = vector.broadcast %cst_10 : f32 to vector<16x128xf32>
    %26 = arith.maximumf %25, %24 : vector<16x128xf32>
    %27 = vector.broadcast %cst_11 : f32 to vector<16x128xf32>
    %28 = arith.minimumf %27, %26 : vector<16x128xf32>
    %c0_12 = arith.constant 0 : index
    %c0_13 = arith.constant 0 : index
    %29 = vector.load %arg6[%c0_12, %c0_13] : memref<8x128xf32, #tpu.memory_space<vmem>>, vector<8x128xf32>
    %30 = vector.shape_cast %21 : vector<16x128xf32> to vector<2x8x128xf32>
    %cst_14 = arith.constant dense<0.000000e+00> : vector<8x128xf32>
    %31 = vector.multi_reduction <add>, %30, %cst_14 [0] : vector<2x8x128xf32> to vector<8x128xf32>
    %32 = arith.addf %29, %31 : vector<8x128xf32>
    %c0_15 = arith.constant 0 : index
    %c0_16 = arith.constant 0 : index
    %33 = vector.load %arg6[%c0_15, %c0_16] : memref<8x128xf32, #tpu.memory_space<vmem>>, vector<8x128xf32>
    tpu.vector_store %arg6[%c0_15, %c0_16], %32 {strides = array<i32>} : memref<8x128xf32, #tpu.memory_space<vmem>>, vector<8x128xf32>,
    %c0_17 = arith.constant 0 : index
    %c0_18 = arith.constant 0 : index
    %34 = vector.load %arg7[%c0_17, %c0_18] : memref<8x128xf32, #tpu.memory_space<vmem>>, vector<8x128xf32>
    %35 = vector.shape_cast %28 : vector<16x128xf32> to vector<2x8x128xf32>
    %cst_19 = arith.constant dense<0.000000e+00> : vector<8x128xf32>
    %36 = vector.multi_reduction <add>, %35, %cst_19 [0] : vector<2x8x128xf32> to vector<8x128xf32>
    %37 = arith.addf %34, %36 : vector<8x128xf32>
    %c0_20 = arith.constant 0 : index
    %c0_21 = arith.constant 0 : index
    %38 = vector.load %arg7[%c0_20, %c0_21] : memref<8x128xf32, #tpu.memory_space<vmem>>, vector<8x128xf32>
    tpu.vector_store %arg7[%c0_20, %c0_21], %37 {strides = array<i32>} : memref<8x128xf32, #tpu.memory_space<vmem>>, vector<8x128xf32>,
    return
  }
  func.func @transform_0(%arg0: i32, %arg1: i32) -> (i32, i32) {
    %c1_i32 = arith.constant 1 : i32
    %0 = arith.muli %arg0, %c1_i32 : i32
    %1 = arith.addi %0, %arg1 : i32
    %c0_i32 = arith.constant 0 : i32
    %2 = arith.minsi %1, %c0_i32 : i32
    %c0_i32_0 = arith.constant 0 : i32
    %c0_i32_1 = arith.constant 0 : i32
    return %2, %c0_i32_0 : i32, i32
  }
  func.func @transform_1(%arg0: i32, %arg1: i32) -> (i32, i32) {
    %c1_i32 = arith.constant 1 : i32
    %0 = arith.muli %arg0, %c1_i32 : i32
    %1 = arith.addi %0, %arg1 : i32
    %c0_i32 = arith.constant 0 : i32
    %2 = arith.minsi %1, %c0_i32 : i32
    %c0_i32_0 = arith.constant 0 : i32
    %c0_i32_1 = arith.constant 0 : i32
    return %2, %c0_i32_0 : i32, i32
  }
  func.func @transform_2(%arg0: i32, %arg1: i32) -> (i32, i32) {
    %c1_i32 = arith.constant 1 : i32
    %0 = arith.muli %arg0, %c1_i32 : i32
    %1 = arith.addi %0, %arg1 : i32
    %c0_i32 = arith.constant 0 : i32
    %2 = arith.minsi %1, %c0_i32 : i32
    %c0_i32_0 = arith.constant 0 : i32
    %c0_i32_1 = arith.constant 0 : i32
    return %2, %c0_i32_0 : i32, i32
  }
  func.func @transform_3(%arg0: i32, %arg1: i32) -> (i32, i32) {
    %c1_i32 = arith.constant 1 : i32
    %0 = arith.muli %arg0, %c1_i32 : i32
    %1 = arith.addi %0, %arg1 : i32
    %c0_i32 = arith.constant 0 : i32
    %2 = arith.minsi %1, %c0_i32 : i32
    %c0_i32_0 = arith.constant 0 : i32
    %c0_i32_1 = arith.constant 0 : i32
    return %2, %c0_i32_0 : i32, i32
  }
  func.func @transform_4(%arg0: i32, %arg1: i32) -> (i32, i32) {
    %c0_i32 = arith.constant 0 : i32
    %c0_i32_0 = arith.constant 0 : i32
    return %arg0, %c0_i32 : i32, i32
  }
  func.func @transform_5(%arg0: i32, %arg1: i32) -> (i32, i32) {
    %c0_i32 = arith.constant 0 : i32
    %c0_i32_0 = arith.constant 0 : i32
    return %arg0, %c0_i32 : i32, i32
  }
}

</mosaic_0001>

<llo_original>
// kernel: tpu_custom_call.1
$region0: #{tpu_custom_call.1}
  #allocation0 [shape = 'u32[]', space=smem, size = 0x4, offset = 0x4, fixed_abs, tag = 'smem constant byte address 0x4 - core index']
  #allocation1 [shape = 'u32[144,128]{1,0:T(1,128)}', space=vmem, size = 0x12000, scoped, tag = 'internal scratch']
  %s0 = inlined_call_operand.hbm [shape: f32[16,128], index: 0, kind: input, shape index: {}]
  %s1 = inlined_call_operand.hbm [shape: f32[16,128], index: 1, kind: input, shape index: {}]
  %s2 = inlined_call_operand.hbm [shape: f32[16,128], index: 2, kind: input, shape index: {}]
  %s3 = inlined_call_operand.hbm [shape: f32[16,128], index: 3, kind: input, shape index: {}]
  %s4 = inlined_call_operand.hbm [shape: f32[8,128], index: 4, kind: output, shape index: {0}]
  %s5 = inlined_call_operand.hbm [shape: f32[8,128], index: 5, kind: output, shape index: {1}]
  %6 = xla_tuple %s4, %s5
  %s7 = sld [smem:[#allocation0]]
  $region54: #{tpu_custom_call.1} parent=0
    _
  %s9 = ssub.s32 1, %s7
  %s10 = scalar_select 0, %s9, %s7
  $region1: #{tpu_custom_call.1} parent=0
    #allocation2 [shape = 'u8[8192]{0}', space=vmem, size = 0x2000, scoped, tag = 'input window, operand 0, single buffered']
    #allocation3 [shape = 's32[1]{0}', space=sflag, size = 0x4, scoped, tag = 'scoped memory for tpu_custom_call.1']
    #allocation4 [shape = 's32[1]{0}', space=sflag, size = 0x4, scoped, tag = 'scoped memory for tpu_custom_call.1']
    #allocation5 [shape = 'u8[8192]{0}', space=vmem, size = 0x2000, scoped, tag = 'input window, operand 1, single buffered']
    #allocation6 [shape = 's32[1]{0}', space=sflag, size = 0x4, scoped, tag = 'scoped memory for tpu_custom_call.1']
    #allocation7 [shape = 'u8[8192]{0}', space=vmem, size = 0x2000, scoped, tag = 'input window, operand 2, single buffered']
    #allocation8 [shape = 'u8[8192]{0}', space=vmem, size = 0x2000, scoped, tag = 'input window, operand 3, single buffered']
    #allocation9 [shape = 's32[1]{0}', space=sflag, size = 0x4, scoped, tag = 'scoped memory for tpu_custom_call.1']
    #allocation10 [shape = 'u8[4096]{0}', space=vmem, size = 0x1000, scoped, tag = 'output window, operand 0, single buffered']
    #allocation11 [shape = 'u8[4096]{0}', space=vmem, size = 0x1000, scoped, tag = 'output window, operand 1, single buffered']
    #allocation12 [shape = 's32[1]{0}', space=sflag, size = 0x4, scoped, tag = 'scoped memory for tpu_custom_call.1']
    %11 = vsyncpa [#allocation3], 0
    %12 = vsyncpa [#allocation6], 0
    %13 = vsyncpa [#allocation9], 0
    %14 = vsyncpa [#allocation4], 0
    %15 = vsyncpa [#allocation12], 0
    // Predicated region
    $region2: #{tpu_custom_call.1} parent=1 // pred_check
      _
    $region3: #{tpu_custom_call.1} parent=1 // pred_check_branch
      %17 = sbr.rel (0) target = $region5
    $region4: #{tpu_custom_call.1} parent=1 // pred_region
      %s18 = sadd.s32 0, 0
      %p19 = scmp.lt.s32.totalorder %s18, 0
      %s20 = scalar_select %p19, %s18, 0
      %s21 = smul.u32 2, %s20
      %s23 = ssub.s32 256, 256
      %24 = vsyncadd [#allocation3], %s23
      %s25 = smul.addr %s21, 128
      %s26 = scalar_lea.hbm %s0, %s25
      %s27 = sshll.u32 [#allocation2], 4
      %s28 = int_to_ptr.vmem [resolvable:$true] %s27
      %33 = dma.hbm_to_vmem [thread:$0]  %s26, 256, %s28, [#allocation3], 128, 128, 8
    $region5: #{tpu_custom_call.1} parent=1 // pred_fallthru
      _
    // Predicated region
    $region6: #{tpu_custom_call.1} parent=1 // pred_check
      _
    $region7: #{tpu_custom_call.1} parent=1 // pred_check_branch
      %35 = sbr.rel (0) target = $region9
    $region8: #{tpu_custom_call.1} parent=1 // pred_region
      %s36 = sadd.s32 0, 0
      %p37 = scmp.lt.s32.totalorder %s36, 0
      %s38 = scalar_select %p37, %s36, 0
      %s39 = smul.u32 2, %s38
      %s41 = ssub.s32 256, 256
      %42 = vsyncadd [#allocation6], %s41
      %s43 = smul.addr %s39, 128
      %s44 = scalar_lea.hbm %s1, %s43
      %s45 = sshll.u32 [#allocation5], 4
      %s46 = int_to_ptr.vmem [resolvable:$true] %s45
      %51 = dma.hbm_to_vmem [thread:$0]  %s44, 256, %s46, [#allocation6], 128, 128, 8
    $region9: #{tpu_custom_call.1} parent=1 // pred_fallthru
      _
    // Predicated region
    $region10: #{tpu_custom_call.1} parent=1 // pred_check
      _
    $region11: #{tpu_custom_call.1} parent=1 // pred_check_branch
      %53 = sbr.rel (0) target = $region13
    $region12: #{tpu_custom_call.1} parent=1 // pred_region
      %s54 = sadd.s32 0, 0
      %p55 = scmp.lt.s32.totalorder %s54, 0
      %s56 = scalar_select %p55, %s54, 0
      %s57 = smul.u32 2, %s56
      %s59 = ssub.s32 256, 256
      %60 = vsyncadd [#allocation6], %s59
      %s61 = smul.addr %s57, 128
      %s62 = scalar_lea.hbm %s2, %s61
      %s63 = sshll.u32 [#allocation7], 4
      %s64 = int_to_ptr.vmem [resolvable:$true] %s63
      %69 = dma.hbm_to_vmem [thread:$0]  %s62, 256, %s64, [#allocation6], 128, 128, 8
    $region13: #{tpu_custom_call.1} parent=1 // pred_fallthru
      _
    // Predicated region
    $region14: #{tpu_custom_call.1} parent=1 // pred_check
      _
    $region15: #{tpu_custom_call.1} parent=1 // pred_check_branch
      %71 = sbr.rel (0) target = $region17
    $region16: #{tpu_custom_call.1} parent=1 // pred_region
      %s72 = sadd.s32 0, 0
      %p73 = scmp.lt.s32.totalorder %s72, 0
      %s74 = scalar_select %p73, %s72, 0
      %s75 = smul.u32 2, %s74
      %s77 = ssub.s32 256, 256
      %78 = vsyncadd [#allocation9], %s77
      %s79 = smul.addr %s75, 128
      %s80 = scalar_lea.hbm %s3, %s79
      %s81 = sshll.u32 [#allocation8], 4
      %s82 = int_to_ptr.vmem [resolvable:$true] %s81
      %87 = dma.hbm_to_vmem [thread:$0]  %s80, 256, %s82, [#allocation9], 128, 128, 8
    $region17: #{tpu_custom_call.1} parent=1 // pred_fallthru
      _
    // Predicated region
    $region18: #{tpu_custom_call.1} parent=1 // pred_check
      _
    $region19: #{tpu_custom_call.1} parent=1 // pred_check_branch
      %89 = sbr.rel (0) target = $region21
    $region20: #{tpu_custom_call.1} parent=1 // pred_region
      %90 = dma.done [#allocation3], 256
    $region21: #{tpu_custom_call.1} parent=1 // pred_fallthru
      _
    // Predicated region
    $region22: #{tpu_custom_call.1} parent=1 // pred_check
      _
    $region23: #{tpu_custom_call.1} parent=1 // pred_check_branch
      %92 = sbr.rel (0) target = $region25
    $region24: #{tpu_custom_call.1} parent=1 // pred_region
      %93 = dma.done [#allocation6], 256
    $region25: #{tpu_custom_call.1} parent=1 // pred_fallthru
      _
    // Predicated region
    $region26: #{tpu_custom_call.1} parent=1 // pred_check
      _
    $region27: #{tpu_custom_call.1} parent=1 // pred_check_branch
      %95 = sbr.rel (0) target = $region29
    $region28: #{tpu_custom_call.1} parent=1 // pred_region
      %96 = dma.done [#allocation6], 256
    $region29: #{tpu_custom_call.1} parent=1 // pred_fallthru
      _
    // Predicated region
    $region30: #{tpu_custom_call.1} parent=1 // pred_check
      _
    $region31: #{tpu_custom_call.1} parent=1 // pred_check_branch
      %98 = sbr.rel (0) target = $region33
    $region32: #{tpu_custom_call.1} parent=1 // pred_region
      %99 = dma.done [#allocation9], 256
    $region33: #{tpu_custom_call.1} parent=1 // pred_fallthru
      _
    %s100 = sadd.s32 0, 0
    %p101 = scmp.lt.s32.totalorder %s100, 0
    %s102 = scalar_select %p101, %s100, 0
    %s103 = smul.u32 2, %s102
    %s104 = sadd.s32 0, 0
    %p105 = scmp.lt.s32.totalorder %s104, 0
    %s106 = scalar_select %p105, %s104, 0
    %s107 = smul.u32 2, %s106
    %s108 = sadd.s32 0, 0
    %p109 = scmp.lt.s32.totalorder %s108, 0
    %s110 = scalar_select %p109, %s108, 0
    %s111 = smul.u32 2, %s110
    %s112 = sadd.s32 0, 0
    %p113 = scmp.lt.s32.totalorder %s112, 0
    %s114 = scalar_select %p113, %s112, 0
    %s115 = smul.u32 2, %s114
    %p116 = scmp.eq.s32.totalorder 0, 0
    // Predicated region
    $region34: #{tpu_custom_call.1} parent=1 // pred_check
      %p117 = pneg %p116
    $region35: #{tpu_custom_call.1} parent=1 // pred_check_branch
      %119 = sbr.rel (%p117) target = $region37
    $region36: #{tpu_custom_call.1} parent=1 // pred_region
      %120 = vst [vmem:[#allocation10] sm:$0xff] 0.0
      %121 = vst [vmem:[#allocation11] sm:$0xff] 0.0
    $region37: #{tpu_custom_call.1} parent=1 // pred_fallthru
      _
    %v122 = vld [vmem:[#allocation2] sm:$0xff]
    %v123 = vld [vmem:[#allocation2 + $0x8] sm:$0xff]
    %v124 = vld [vmem:[#allocation5] sm:$0xff]
    %v125 = vld [vmem:[#allocation5 + $0x8] sm:$0xff]
    %v126 = vld [vmem:[#allocation7] sm:$0xff]
    %v127 = vld [vmem:[#allocation7 + $0x8] sm:$0xff]
    %v128 = vld [vmem:[#allocation8] sm:$0xff]
    %v129 = vld [vmem:[#allocation8 + $0x8] sm:$0xff]
    %v130 = vadd.f32 %v122, %v124
    %v131 = vadd.f32 %v123, %v125
    %v132 = vmul.f32 %v122, 2.0
    %v133 = vmul.f32 %v123, 2.0
    %v134 = vmul.f32 %v132, %v124
    %v135 = vmul.f32 %v133, %v125
    %v136 = vsub.f32 %v130, %v134
    %v137 = vsub.f32 %v131, %v135
    %v138 = vadd.f32 %v126, %v128
    %v139 = vadd.f32 %v127, %v129
    %v140 = vmul.f32 %v126, 2.0
    %v141 = vmul.f32 %v127, 2.0
    %v142 = vmul.f32 %v140, %v128
    %v143 = vmul.f32 %v141, %v129
    %v144 = vsub.f32 %v138, %v142
    %v145 = vsub.f32 %v139, %v143
    %v146 = vadd.f32 %v136, %v144
    %v147 = vadd.f32 %v137, %v145
    %v148 = vmul.f32 %v136, 2.0
    %v149 = vmul.f32 %v137, 2.0
    %v150 = vmul.f32 %v148, %v144
    %v151 = vmul.f32 %v149, %v145
    %v152 = vsub.f32 %v146, %v150
    %v153 = vsub.f32 %v147, %v151
    %v154 = vadd.f32 %v130, %v126
    %v155 = vadd.f32 %v131, %v127
    %v156 = vadd.f32 %v154, %v128
    %v157 = vadd.f32 %v155, %v129
    %v158 = vmax.f32 %v156, 0.0
    %v159 = vmax.f32 %v157, 0.0
    %v160 = vmin.f32 %v158, 1.0
    %v161 = vmin.f32 %v159, 1.0
    %v162 = vld [vmem:[#allocation10] sm:$0xff]
    %v163 = vadd.f32 %v152, %v153
    %v164 = vadd.f32 %v162, %v163
    %165 = vst [vmem:[#allocation10] sm:$0xff] %v164
    %v166 = vld [vmem:[#allocation11] sm:$0xff]
    %v167 = vadd.f32 %v160, %v161
    %v168 = vadd.f32 %v166, %v167
    %169 = vst [vmem:[#allocation11] sm:$0xff] %v168
    // Predicated region
    $region38: #{tpu_custom_call.1} parent=1 // pred_check
      _
    $region39: #{tpu_custom_call.1} parent=1 // pred_check_branch
      %171 = sbr.rel (0) target = $region41
    $region40: #{tpu_custom_call.1} parent=1 // pred_region
      %s173 = ssub.s32 128, 128
      %174 = vsyncadd [#allocation4], %s173
      %s176 = sshll.u32 [#allocation10], 4
      %s177 = int_to_ptr.vmem [resolvable:$true] %s176
      %179 = dma.vmem_to_hbm [thread:$0]  %s177, 128, %s4, [#allocation4]
    $region41: #{tpu_custom_call.1} parent=1 // pred_fallthru
      _
    // Predicated region
    $region42: #{tpu_custom_call.1} parent=1 // pred_check
      _
    $region43: #{tpu_custom_call.1} parent=1 // pred_check_branch
      %181 = sbr.rel (0) target = $region45
    $region44: #{tpu_custom_call.1} parent=1 // pred_region
      %s183 = ssub.s32 128, 128
      %184 = vsyncadd [#allocation12], %s183
      %s186 = sshll.u32 [#allocation11], 4
      %s187 = int_to_ptr.vmem [resolvable:$true] %s186
      %189 = dma.vmem_to_hbm [thread:$0]  %s187, 128, %s5, [#allocation12]
    $region45: #{tpu_custom_call.1} parent=1 // pred_fallthru
      _
    // Predicated region
    $region46: #{tpu_custom_call.1} parent=1 // pred_check
      _
    $region47: #{tpu_custom_call.1} parent=1 // pred_check_branch
      %191 = sbr.rel (0) target = $region49
    $region48: #{tpu_custom_call.1} parent=1 // pred_region
      %192 = dma.done [#allocation4], 128
    $region49: #{tpu_custom_call.1} parent=1 // pred_fallthru
      _
    // Predicated region
    $region50: #{tpu_custom_call.1} parent=1 // pred_check
      _
    $region51: #{tpu_custom_call.1} parent=1 // pred_check_branch
      %194 = sbr.rel (0) target = $region53
    $region52: #{tpu_custom_call.1} parent=1 // pred_region
      %195 = dma.done [#allocation12], 128
    $region53: #{tpu_custom_call.1} parent=1 // pred_fallthru
      _
    %196 = vsyncpa [#allocation3], 1
    %197 = vsyncpa [#allocation6], 1
    %198 = vsyncpa [#allocation9], 1
    %199 = vsyncpa [#allocation4], 1
    %200 = vsyncpa [#allocation12], 1

</llo_original>
